<compile_context>
chip_gen: v7x
topology: tpu7x:2x2x1
jax: 0.10.0
libtpu: 0.0.40
codegen_flags: <defaults>
</compile_context>

<pallas_src>
import jax
import jax.numpy as jnp
from jax.experimental import pallas as pl
from jax.experimental.pallas import tpu as pltpu


# ----------------------------------------------------------------------------
# Fused Pallas kernel
# ----------------------------------------------------------------------------
def make_fused_kernel(n_layers, num_rels):
    """Build the fused forward kernel for a fixed (n_layers, num_rels) config."""
    r_ext = num_rels + 1  # relations + self-loop identity block

    def kernel(*refs):
        # ---- unpack refs (inputs..., outputs...) ---------------------------
        it = iter(refs)
        a_cat_ref = next(it)            # (N, (R+1)*N)      f32   [A_0 | ... | A_{R-1} | I]
        h_ref = next(it)                # (N, F_in)         bf16  initial node features
        e_ref = next(it)                # (E, rel_in)       bf16  edge features
        layer_refs = [(next(it), next(it)) for _ in range(n_layers)]
        w_msg_ref = next(it)            # (out, out)        bf16  msg_loop_linear (transposed)
        b_msg_ref = next(it)            # (1, out)          f32
        w_edge_ref = next(it)           # (rel_in, rel_out) bf16  rel_linear (transposed)
        b_edge_ref = next(it)           # (1, rel_out)      f32
        h_out_ref = next(it)            # (N, out)          f32
        e_out_ref = next(it)            # (E, rel_out)      f32

        a_cat = a_cat_ref[...]          # f32 adjacency, resident in VMEM across all layers

        # ---- stacked RelGraphConv layers (statically unrolled, h lives in VMEM) ----
        h_bf = h_ref[...]               # already bf16 -> no f32 round-trip for layer 0
        for (w_all_ref, b_ref) in layer_refs:
            fo = w_all_ref.shape[1] // r_ext
            # One MXU pass over all relations + self loop: (N, F_in) @ (F_in, (R+1)*Fo).
            hw = jnp.dot(h_bf, w_all_ref[...], preferred_element_type=jnp.float32)
            # Relayout (N, (R+1)*Fo) -> ((R+1)*N, Fo): static lane slices + sublane concat
            # (runs on the otherwise-idle XLU/VPU slots, no extra MXU work).
            hw_stacked = jnp.concatenate(
                [hw[:, r * fo:(r + 1) * fo] for r in range(r_ext)], axis=0)
            # Second MXU pass: relation sum AND the self-loop add are MXU accumulation.
            agg = jnp.dot(a_cat, hw_stacked, preferred_element_type=jnp.float32)
            h = jnp.maximum(agg + b_ref[...], 0.0)       # fused bias + ReLU epilogue (VPU)
            h_bf = h.astype(jnp.bfloat16)

        # ---- apply_nodes: self_loop branch -> h_out = relu(msg_loop_linear(h)) ----
        h_fin = jnp.dot(h_bf, w_msg_ref[...],
                        preferred_element_type=jnp.float32) + b_msg_ref[...]
        h_out_ref[...] = jnp.maximum(h_fin, 0.0)

        # ---- apply_edges: e_out = rel_linear(e_h) ----
        # TODO(synk): at production E, tile this over its own "parallel" grid axis so it
        # streams from HBM and (on v7x) the second TensorCore can absorb it.
        e_out_ref[...] = (jnp.dot(e_ref[...], w_edge_ref[...],
                                  preferred_element_type=jnp.float32)
                          + b_edge_ref[...])

    return kernel


def _full_spec(shape):
    zeros = (0,) * len(shape)
    return pl.BlockSpec(shape, lambda i, z=zeros: z)


def trgcn_dg_forward(a_cat, h0, e_h, fused_layers, w_msg_t, b_msg, w_edge_t, b_edge,
                     num_rels):
    """Full tRGCN_dg forward in one pallas_call. Returns (h_out, e_out)."""
    n_layers = len(fused_layers)
    n = a_cat.shape[0]
    e = e_h.shape[0]
    out_dim = w_msg_t.shape[1]
    rel_out = w_edge_t.shape[1]

    inputs = [a_cat, h0, e_h]
    for (w_all, b) in fused_layers:
        inputs += [w_all, b]
    inputs += [w_msg_t, b_msg, w_edge_t, b_edge]

    return pl.pallas_call(
        make_fused_kernel(n_layers, num_rels),
        out_shape=(
            jax.ShapeDtypeStruct((n, out_dim), jnp.float32),
            jax.ShapeDtypeStruct((e, rel_out), jnp.float32),
        ),
        grid=(1,),
        in_specs=[_full_spec(x.shape) for x in inputs],
        out_specs=(
            _full_spec((n, out_dim)),
            _full_spec((e, rel_out)),
        ),
        compiler_params=pltpu.CompilerParams(dimension_semantics=("arbitrary",)),
    )(*inputs)


# ----------------------------------------------------------------------------
# Glue: graph construction, degree norm, deterministic params, reference check
# ----------------------------------------------------------------------------
if __name__ == "__main__":
    # Config consistent with tRGCN_dg.__init__
    node_in_feat, hid_dim, node_out_feat = 8, 32, 16
    rel_in_feat, rel_out_feat = 8, 16
    n_layers, num_rels = 2, 3
    N = 16

    key = jax.random.PRNGKey(0)
    keys = jax.random.split(key, 16)

    # Deterministic multi-relational graph: forward ring + skip-3 ring.
    idx = jnp.arange(N, dtype=jnp.int32)
    src = jnp.concatenate([idx, idx])
    dst = jnp.concatenate([(idx + 1) % N, (idx + 3) % N])
    etype = jnp.concatenate([idx % num_rels, (idx + 1) % num_rels])
    E = int(src.shape[0])

    # node_norm_to_edge_norm: node norm = 1/in_deg, gathered onto edges via dst.
    in_deg = jnp.zeros((N,), jnp.float32).at[dst].add(1.0)
    node_norm = 1.0 / jnp.maximum(in_deg, 1.0)
    edge_norm = node_norm[dst]

    # Dense per-relation normalized adjacency: A[r, d, s] += edge_norm[e] for e=(s->d, r).
    # Kept in f32 for fidelity (exact 1/in_deg norms, exact identity self-loop block).
    a_rel = jnp.zeros((num_rels, N, N), jnp.float32).at[etype, dst, src].add(edge_norm)
    a_cat = jnp.concatenate([a_rel[r] for r in range(num_rels)]
                            + [jnp.eye(N, dtype=jnp.float32)], axis=1)   # (N, (R+1)*N)

    # Features
    h0 = jax.random.normal(keys[0], (N, node_in_feat), jnp.float32)
    e_h = jax.random.normal(keys[1], (E, rel_in_feat), jnp.float32)

    # Parameters. RelGraphConv layer dims: (in->in) x (n_layers-1), then (in->out).
    def xavier(k, shape):
        fan_in, fan_out = shape[-2], shape[-1]
        bound = (6.0 / (fan_in + fan_out)) ** 0.5
        return jax.random.uniform(k, shape, jnp.float32, -bound, bound)

    layer_dims = [(node_in_feat, node_in_feat)] * (n_layers - 1) + [(node_in_feat, node_out_feat)]
    layer_params = []
    for li, (fi, fo) in enumerate(layer_dims):
        k1, k2, k3 = jax.random.split(keys[2 + li], 3)
        w_rel = xavier(k1, (num_rels, fi, fo))   # effective per-relation (basis-combined) weights
        w_loop = xavier(k2, (fi, fo))            # self-loop weight
        b = 0.1 * jax.random.normal(k3, (1, fo), jnp.float32)
        layer_params.append((w_rel, w_loop, b))

    # msg_loop_linear (out->out) and rel_linear (rel_in->rel_out); nn.Linear is x @ W^T + b,
    # so the kernel receives already-transposed weights.
    w_msg_t = xavier(keys[8], (node_out_feat, node_out_feat))
    b_msg = 0.1 * jax.random.normal(keys[9], (1, node_out_feat), jnp.float32)
    w_edge_t = xavier(keys[10], (rel_in_feat, rel_out_feat))
    b_edge = 0.1 * jax.random.normal(keys[11], (1, rel_out_feat), jnp.float32)

    # bf16 MXU operands (features / weights); f32 adjacency, biases and accumulation.
    bf = lambda x: x.astype(jnp.bfloat16)
    h0_b, e_h_b = bf(h0), bf(e_h)
    fused_layers = []
    for (w_rel, w_loop, b) in layer_params:
        # W_all = [W_0 | W_1 | ... | W_{R-1} | W_loop]  (F_in, (R+1)*F_out)
        w_all = jnp.concatenate([w_rel[r] for r in range(num_rels)] + [w_loop], axis=1)
        fused_layers.append((bf(w_all), b))
    w_msg_b, w_edge_b = bf(w_msg_t), bf(w_edge_t)

    # Run the fused Pallas forward.
    h_out, e_out = trgcn_dg_forward(a_cat, h0_b, e_h_b, fused_layers,
                                    w_msg_b, b_msg, w_edge_b, b_edge, num_rels)
    h_out = jax.block_until_ready(h_out)
    e_out = jax.block_until_ready(e_out)

    # Pure-JAX reference: per-relation (unfused) formulation with the same casting
    # (bf16 weights/features, f32 adjacency and accumulation) -- independent of the
    # kernel's fused A_cat / W_all layout, so it also validates the concatenation.
    def ref_forward():
        h_bf = h0_b
        for (w_rel, w_loop, b) in layer_params:
            w_rel_b, w_loop_b = bf(w_rel), bf(w_loop)
            agg = jnp.zeros((N, w_loop.shape[1]), jnp.float32)
            for r in range(num_rels):
                hw = jnp.dot(h_bf, w_rel_b[r], preferred_element_type=jnp.float32)
                agg = agg + jnp.dot(a_rel[r], hw, preferred_element_type=jnp.float32)
            loop = jnp.dot(h_bf, w_loop_b, preferred_element_type=jnp.float32)
            h = jnp.maximum(agg + loop + b, 0.0)
            h_bf = h.astype(jnp.bfloat16)
        h_fin = jnp.maximum(
            jnp.dot(h_bf, w_msg_b, preferred_element_type=jnp.float32) + b_msg, 0.0)
        e_fin = jnp.dot(e_h_b, w_edge_b, preferred_element_type=jnp.float32) + b_edge
        return h_fin, e_fin

    h_ref, e_ref = ref_forward()

    assert h_out.shape == (N, node_out_feat) and e_out.shape == (E, rel_out_feat)
    assert jnp.allclose(h_out, h_ref, atol=1e-2, rtol=1e-2), \
        float(jnp.max(jnp.abs(h_out - h_ref)))
    assert jnp.allclose(e_out, e_ref, atol=1e-2, rtol=1e-2), \
        float(jnp.max(jnp.abs(e_out - e_ref)))

    print("KERNEL_OK")
</pallas_src>

<mosaic_0001>
module attributes {stable_mosaic.version = 11 : i64} {
  func.func @kernel(%arg0: i32, %arg1: memref<16x64xf32, #tpu.memory_space<vmem>>, %arg2: memref<16x8xbf16, #tpu.memory_space<vmem>>, %arg3: memref<32x8xbf16, #tpu.memory_space<vmem>>, %arg4: memref<8x32xbf16, #tpu.memory_space<vmem>>, %arg5: memref<1x8xf32, #tpu.memory_space<vmem>>, %arg6: memref<8x64xbf16, #tpu.memory_space<vmem>>, %arg7: memref<1x16xf32, #tpu.memory_space<vmem>>, %arg8: memref<16x16xbf16, #tpu.memory_space<vmem>>, %arg9: memref<1x16xf32, #tpu.memory_space<vmem>>, %arg10: memref<8x16xbf16, #tpu.memory_space<vmem>>, %arg11: memref<1x16xf32, #tpu.memory_space<vmem>>, %arg12: memref<16x16xf32, #tpu.memory_space<vmem>>, %arg13: memref<32x16xf32, #tpu.memory_space<vmem>>) attributes {dimension_semantics = [#tpu.dimension_semantics<arbitrary>], iteration_bounds = array<i64: 1>, scalar_prefetch = 0 : i64, scratch_operands = 0 : i64, tpu.core_type = #tpu.core_type<tc>, window_params = [{pipeline_mode = #tpu.pipeline_mode<synchronous>, transform_indices = @transform_0, window_bounds = array<i64: 16, 64>}, {pipeline_mode = #tpu.pipeline_mode<synchronous>, transform_indices = @transform_1, window_bounds = array<i64: 16, 8>}, {pipeline_mode = #tpu.pipeline_mode<synchronous>, transform_indices = @transform_2, window_bounds = array<i64: 32, 8>}, {pipeline_mode = #tpu.pipeline_mode<synchronous>, transform_indices = @transform_3, window_bounds = array<i64: 8, 32>}, {pipeline_mode = #tpu.pipeline_mode<synchronous>, transform_indices = @transform_4, window_bounds = array<i64: 1, 8>}, {pipeline_mode = #tpu.pipeline_mode<synchronous>, transform_indices = @transform_5, window_bounds = array<i64: 8, 64>}, {pipeline_mode = #tpu.pipeline_mode<synchronous>, transform_indices = @transform_6, window_bounds = array<i64: 1, 16>}, {pipeline_mode = #tpu.pipeline_mode<synchronous>, transform_indices = @transform_7, window_bounds = array<i64: 16, 16>}, {pipeline_mode = #tpu.pipeline_mode<synchronous>, transform_indices = @transform_8, window_bounds = array<i64: 1, 16>}, {pipeline_mode = #tpu.pipeline_mode<synchronous>, transform_indices = @transform_9, window_bounds = array<i64: 8, 16>}, {pipeline_mode = #tpu.pipeline_mode<synchronous>, transform_indices = @transform_10, window_bounds = array<i64: 1, 16>}, {pipeline_mode = #tpu.pipeline_mode<synchronous>, transform_indices = @transform_11, window_bounds = array<i64: 16, 16>}, {pipeline_mode = #tpu.pipeline_mode<synchronous>, transform_indices = @transform_12, window_bounds = array<i64: 32, 16>}]} {
    %c0 = arith.constant 0 : index
    %c0_0 = arith.constant 0 : index
    %0 = vector.load %arg1[%c0, %c0_0] : memref<16x64xf32, #tpu.memory_space<vmem>>, vector<16x64xf32>
    %c0_1 = arith.constant 0 : index
    %c0_2 = arith.constant 0 : index
    %1 = vector.load %arg2[%c0_1, %c0_2] : memref<16x8xbf16, #tpu.memory_space<vmem>>, vector<16x8xbf16>
    %c0_3 = arith.constant 0 : index
    %c0_4 = arith.constant 0 : index
    %2 = vector.load %arg4[%c0_3, %c0_4] : memref<8x32xbf16, #tpu.memory_space<vmem>>, vector<8x32xbf16>
    %cst = arith.constant dense<0.000000e+00> : vector<16x32xf32>
    %3 = tpu.matmul %1, %2, %cst {dimension_numbers = #tpu.dot_dimension_numbers<[1], [0], [0], [1], [0, 0, 1, 1], [], []>} : vector<16x8xbf16>, vector<8x32xbf16>, vector<16x32xf32> -> vector<16x32xf32>
    %4 = vector.extract_strided_slice %3 {offsets = [0, 0], sizes = [16, 8], strides = [1, 1]} : vector<16x32xf32> to vector<16x8xf32>
    %5 = vector.extract_strided_slice %3 {offsets = [0, 8], sizes = [16, 8], strides = [1, 1]} : vector<16x32xf32> to vector<16x8xf32>
    %6 = vector.extract_strided_slice %3 {offsets = [0, 16], sizes = [16, 8], strides = [1, 1]} : vector<16x32xf32> to vector<16x8xf32>
    %7 = vector.extract_strided_slice %3 {offsets = [0, 24], sizes = [16, 8], strides = [1, 1]} : vector<16x32xf32> to vector<16x8xf32>
    %8 = tpu.concatenate %4, %5, %6, %7 in 0 : vector<16x8xf32>, vector<16x8xf32>, vector<16x8xf32>, vector<16x8xf32> -> vector<64x8xf32>
    %cst_5 = arith.constant dense<0.000000e+00> : vector<16x8xf32>
    %9 = tpu.matmul %0, %8, %cst_5 {dimension_numbers = #tpu.dot_dimension_numbers<[1], [0], [0], [1], [0, 0, 1, 1], [], []>} : vector<16x64xf32>, vector<64x8xf32>, vector<16x8xf32> -> vector<16x8xf32>
    %c0_6 = arith.constant 0 : index
    %c0_7 = arith.constant 0 : index
    %10 = vector.load %arg5[%c0_6, %c0_7] : memref<1x8xf32, #tpu.memory_space<vmem>>, vector<1x8xf32>
    %11 = vector.broadcast %10 : vector<1x8xf32> to vector<16x8xf32>
    %12 = arith.addf %9, %11 : vector<16x8xf32>
    %cst_8 = arith.constant 0.000000e+00 : f32
    %13 = vector.broadcast %cst_8 : f32 to vector<16x8xf32>
    %14 = arith.maximumf %12, %13 : vector<16x8xf32>
    %15 = arith.truncf %14 : vector<16x8xf32> to vector<16x8xbf16>
    %c0_9 = arith.constant 0 : index
    %c0_10 = arith.constant 0 : index
    %16 = vector.load %arg6[%c0_9, %c0_10] : memref<8x64xbf16, #tpu.memory_space<vmem>>, vector<8x64xbf16>
    %cst_11 = arith.constant dense<0.000000e+00> : vector<16x64xf32>
    %17 = tpu.matmul %15, %16, %cst_11 {dimension_numbers = #tpu.dot_dimension_numbers<[1], [0], [0], [1], [0, 0, 1, 1], [], []>} : vector<16x8xbf16>, vector<8x64xbf16>, vector<16x64xf32> -> vector<16x64xf32>
    %18 = vector.extract_strided_slice %17 {offsets = [0, 0], sizes = [16, 16], strides = [1, 1]} : vector<16x64xf32> to vector<16x16xf32>
    %19 = vector.extract_strided_slice %17 {offsets = [0, 16], sizes = [16, 16], strides = [1, 1]} : vector<16x64xf32> to vector<16x16xf32>
    %20 = vector.extract_strided_slice %17 {offsets = [0, 32], sizes = [16, 16], strides = [1, 1]} : vector<16x64xf32> to vector<16x16xf32>
    %21 = vector.extract_strided_slice %17 {offsets = [0, 48], sizes = [16, 16], strides = [1, 1]} : vector<16x64xf32> to vector<16x16xf32>
    %22 = tpu.concatenate %18, %19, %20, %21 in 0 : vector<16x16xf32>, vector<16x16xf32>, vector<16x16xf32>, vector<16x16xf32> -> vector<64x16xf32>
    %cst_12 = arith.constant dense<0.000000e+00> : vector<16x16xf32>
    %23 = tpu.matmul %0, %22, %cst_12 {dimension_numbers = #tpu.dot_dimension_numbers<[1], [0], [0], [1], [0, 0, 1, 1], [], []>} : vector<16x64xf32>, vector<64x16xf32>, vector<16x16xf32> -> vector<16x16xf32>
    %c0_13 = arith.constant 0 : index
    %c0_14 = arith.constant 0 : index
    %24 = vector.load %arg7[%c0_13, %c0_14] : memref<1x16xf32, #tpu.memory_space<vmem>>, vector<1x16xf32>
    %25 = vector.broadcast %24 : vector<1x16xf32> to vector<16x16xf32>
    %26 = arith.addf %23, %25 : vector<16x16xf32>
    %cst_15 = arith.constant 0.000000e+00 : f32
    %27 = vector.broadcast %cst_15 : f32 to vector<16x16xf32>
    %28 = arith.maximumf %26, %27 : vector<16x16xf32>
    %29 = arith.truncf %28 : vector<16x16xf32> to vector<16x16xbf16>
    %c0_16 = arith.constant 0 : index
    %c0_17 = arith.constant 0 : index
    %30 = vector.load %arg8[%c0_16, %c0_17] : memref<16x16xbf16, #tpu.memory_space<vmem>>, vector<16x16xbf16>
    %cst_18 = arith.constant dense<0.000000e+00> : vector<16x16xf32>
    %31 = tpu.matmul %29, %30, %cst_18 {dimension_numbers = #tpu.dot_dimension_numbers<[1], [0], [0], [1], [0, 0, 1, 1], [], []>} : vector<16x16xbf16>, vector<16x16xbf16>, vector<16x16xf32> -> vector<16x16xf32>
    %c0_19 = arith.constant 0 : index
    %c0_20 = arith.constant 0 : index
    %32 = vector.load %arg9[%c0_19, %c0_20] : memref<1x16xf32, #tpu.memory_space<vmem>>, vector<1x16xf32>
    %33 = vector.broadcast %32 : vector<1x16xf32> to vector<16x16xf32>
    %34 = arith.addf %31, %33 : vector<16x16xf32>
    %cst_21 = arith.constant 0.000000e+00 : f32
    %35 = vector.broadcast %cst_21 : f32 to vector<16x16xf32>
    %36 = arith.maximumf %34, %35 : vector<16x16xf32>
    %c0_22 = arith.constant 0 : index
    %c0_23 = arith.constant 0 : index
    %37 = vector.load %arg12[%c0_22, %c0_23] : memref<16x16xf32, #tpu.memory_space<vmem>>, vector<16x16xf32>
    tpu.vector_store %arg12[%c0_22, %c0_23], %36 {strides = array<i32>} : memref<16x16xf32, #tpu.memory_space<vmem>>, vector<16x16xf32>,
    %c0_24 = arith.constant 0 : index
    %c0_25 = arith.constant 0 : index
    %38 = vector.load %arg3[%c0_24, %c0_25] : memref<32x8xbf16, #tpu.memory_space<vmem>>, vector<32x8xbf16>
    %c0_26 = arith.constant 0 : index
    %c0_27 = arith.constant 0 : index
    %39 = vector.load %arg10[%c0_26, %c0_27] : memref<8x16xbf16, #tpu.memory_space<vmem>>, vector<8x16xbf16>
    %cst_28 = arith.constant dense<0.000000e+00> : vector<32x16xf32>
    %40 = tpu.matmul %38, %39, %cst_28 {dimension_numbers = #tpu.dot_dimension_numbers<[1], [0], [0], [1], [0, 0, 1, 1], [], []>} : vector<32x8xbf16>, vector<8x16xbf16>, vector<32x16xf32> -> vector<32x16xf32>
    %c0_29 = arith.constant 0 : index
    %c0_30 = arith.constant 0 : index
    %41 = vector.load %arg11[%c0_29, %c0_30] : memref<1x16xf32, #tpu.memory_space<vmem>>, vector<1x16xf32>
    %42 = vector.broadcast %41 : vector<1x16xf32> to vector<32x16xf32>
    %43 = arith.addf %40, %42 : vector<32x16xf32>
    %c0_31 = arith.constant 0 : index
    %c0_32 = arith.constant 0 : index
    %44 = vector.load %arg13[%c0_31, %c0_32] : memref<32x16xf32, #tpu.memory_space<vmem>>, vector<32x16xf32>
    tpu.vector_store %arg13[%c0_31, %c0_32], %43 {strides = array<i32>} : memref<32x16xf32, #tpu.memory_space<vmem>>, vector<32x16xf32>,
    return
  }
  func.func @transform_0(%arg0: i32) -> (i32, i32) {
    %c0_i32 = arith.constant 0 : i32
    %c0_i32_0 = arith.constant 0 : i32
    %c0_i32_1 = arith.constant 0 : i32
    return %c0_i32, %c0_i32_0 : i32, i32
  }
  func.func @transform_1(%arg0: i32) -> (i32, i32) {
    %c0_i32 = arith.constant 0 : i32
    %c0_i32_0 = arith.constant 0 : i32
    %c0_i32_1 = arith.constant 0 : i32
    return %c0_i32, %c0_i32_0 : i32, i32
  }
  func.func @transform_2(%arg0: i32) -> (i32, i32) {
    %c0_i32 = arith.constant 0 : i32
    %c0_i32_0 = arith.constant 0 : i32
    %c0_i32_1 = arith.constant 0 : i32
    return %c0_i32, %c0_i32_0 : i32, i32
  }
  func.func @transform_3(%arg0: i32) -> (i32, i32) {
    %c0_i32 = arith.constant 0 : i32
    %c0_i32_0 = arith.constant 0 : i32
    %c0_i32_1 = arith.constant 0 : i32
    return %c0_i32, %c0_i32_0 : i32, i32
  }
  func.func @transform_4(%arg0: i32) -> (i32, i32) {
    %c0_i32 = arith.constant 0 : i32
    %c0_i32_0 = arith.constant 0 : i32
    %c0_i32_1 = arith.constant 0 : i32
    return %c0_i32, %c0_i32_0 : i32, i32
  }
  func.func @transform_5(%arg0: i32) -> (i32, i32) {
    %c0_i32 = arith.constant 0 : i32
    %c0_i32_0 = arith.constant 0 : i32
    %c0_i32_1 = arith.constant 0 : i32
    return %c0_i32, %c0_i32_0 : i32, i32
  }
  func.func @transform_6(%arg0: i32) -> (i32, i32) {
    %c0_i32 = arith.constant 0 : i32
    %c0_i32_0 = arith.constant 0 : i32
    %c0_i32_1 = arith.constant 0 : i32
    return %c0_i32, %c0_i32_0 : i32, i32
  }
  func.func @transform_7(%arg0: i32) -> (i32, i32) {
    %c0_i32 = arith.constant 0 : i32
    %c0_i32_0 = arith.constant 0 : i32
    %c0_i32_1 = arith.constant 0 : i32
    return %c0_i32, %c0_i32_0 : i32, i32
  }
  func.func @transform_8(%arg0: i32) -> (i32, i32) {
    %c0_i32 = arith.constant 0 : i32
    %c0_i32_0 = arith.constant 0 : i32
    %c0_i32_1 = arith.constant 0 : i32
    return %c0_i32, %c0_i32_0 : i32, i32
  }
  func.func @transform_9(%arg0: i32) -> (i32, i32) {
    %c0_i32 = arith.constant 0 : i32
    %c0_i32_0 = arith.constant 0 : i32
    %c0_i32_1 = arith.constant 0 : i32
    return %c0_i32, %c0_i32_0 : i32, i32
  }
  func.func @transform_10(%arg0: i32) -> (i32, i32) {
    %c0_i32 = arith.constant 0 : i32
    %c0_i32_0 = arith.constant 0 : i32
    %c0_i32_1 = arith.constant 0 : i32
    return %c0_i32, %c0_i32_0 : i32, i32
  }
  func.func @transform_11(%arg0: i32) -> (i32, i32) {
    %c0_i32 = arith.constant 0 : i32
    %c0_i32_0 = arith.constant 0 : i32
    %c0_i32_1 = arith.constant 0 : i32
    return %c0_i32, %c0_i32_0 : i32, i32
  }
  func.func @transform_12(%arg0: i32) -> (i32, i32) {
    %c0_i32 = arith.constant 0 : i32
    %c0_i32_0 = arith.constant 0 : i32
    %c0_i32_1 = arith.constant 0 : i32
    return %c0_i32, %c0_i32_0 : i32, i32
  }
}

</mosaic_0001>

<llo_original>
// kernel: tpu_custom_call.1
$region0: #{tpu_custom_call.1}
  #allocation0 [shape = 'u32[]', space=smem, size = 0x4, offset = 0x4, fixed_abs, tag = 'smem constant byte address 0x4 - core index']
  #allocation1 [shape = 'u32[144,128]{1,0:T(1,128)}', space=vmem, size = 0x12000, scoped, tag = 'internal scratch']
  %s0 = inlined_call_operand.vmem [shape: f32[16,64], index: 0, kind: input, shape index: {}]
  %s1 = inlined_call_operand.vmem [shape: bf16[16,8], index: 1, kind: input, shape index: {}]
  %s2 = inlined_call_operand.vmem [shape: bf16[32,8], index: 2, kind: input, shape index: {}]
  %s3 = inlined_call_operand.vmem [shape: bf16[8,32], index: 3, kind: input, shape index: {}]
  %s4 = inlined_call_operand.vmem [shape: f32[1,8], index: 4, kind: input, shape index: {}]
  %s5 = inlined_call_operand.vmem [shape: bf16[8,64], index: 5, kind: input, shape index: {}]
  %s6 = inlined_call_operand.vmem [shape: f32[1,16], index: 6, kind: input, shape index: {}]
  %s7 = inlined_call_operand.vmem [shape: bf16[16,16], index: 7, kind: input, shape index: {}]
  %s8 = inlined_call_operand.vmem [shape: f32[1,16], index: 8, kind: input, shape index: {}]
  %s9 = inlined_call_operand.vmem [shape: bf16[8,16], index: 9, kind: input, shape index: {}]
  %s10 = inlined_call_operand.vmem [shape: f32[1,16], index: 10, kind: input, shape index: {}]
  %s11 = inlined_call_operand.hbm [shape: f32[16,16], index: 11, kind: output, shape index: {0}]
  %s12 = inlined_call_operand.vmem [shape: f32[32,16], index: 12, kind: output, shape index: {1}]
  %13 = xla_tuple %s11, %s12
  %s14 = sld [smem:[#allocation0]]
  $region62: #{tpu_custom_call.1} parent=0
    _
  %s16 = ssub.s32 1, %s14
  %s17 = scalar_select 0, %s16, %s14
  $region1: #{tpu_custom_call.1} parent=0
    #allocation2 [shape = 'u8[8192]{0}', space=vmem, size = 0x2000, scoped, tag = 'output window, operand 0, single buffered']
    #allocation3 [shape = 's32[1]{0}', space=sflag, size = 0x4, scoped, tag = 'scoped memory for tpu_custom_call.1']
    %18 = vsyncpa [#allocation3], 0
    // Predicated region
    $region2: #{tpu_custom_call.1} parent=1 // pred_check
      _
    $region3: #{tpu_custom_call.1} parent=1 // pred_check_branch
      %20 = sbr.rel (0) target = $region5
    $region4: #{tpu_custom_call.1} parent=1 // pred_region
      _
    $region5: #{tpu_custom_call.1} parent=1 // pred_fallthru
      _
    // Predicated region
    $region6: #{tpu_custom_call.1} parent=1 // pred_check
      _
    $region7: #{tpu_custom_call.1} parent=1 // pred_check_branch
      %22 = sbr.rel (0) target = $region9
    $region8: #{tpu_custom_call.1} parent=1 // pred_region
      _
    $region9: #{tpu_custom_call.1} parent=1 // pred_fallthru
      _
    // Predicated region
    $region10: #{tpu_custom_call.1} parent=1 // pred_check
      _
    $region11: #{tpu_custom_call.1} parent=1 // pred_check_branch
      %24 = sbr.rel (0) target = $region13
    $region12: #{tpu_custom_call.1} parent=1 // pred_region
      _
    $region13: #{tpu_custom_call.1} parent=1 // pred_fallthru
      _
    // Predicated region
    $region14: #{tpu_custom_call.1} parent=1 // pred_check
      _
    $region15: #{tpu_custom_call.1} parent=1 // pred_check_branch
      %26 = sbr.rel (0) target = $region17
    $region16: #{tpu_custom_call.1} parent=1 // pred_region
      _
    $region17: #{tpu_custom_call.1} parent=1 // pred_fallthru
      _
    // Predicated region
    $region18: #{tpu_custom_call.1} parent=1 // pred_check
      _
    $region19: #{tpu_custom_call.1} parent=1 // pred_check_branch
      %28 = sbr.rel (0) target = $region21
    $region20: #{tpu_custom_call.1} parent=1 // pred_region
      _
    $region21: #{tpu_custom_call.1} parent=1 // pred_fallthru
      _
    // Predicated region
    $region22: #{tpu_custom_call.1} parent=1 // pred_check
      _
    $region23: #{tpu_custom_call.1} parent=1 // pred_check_branch
      %30 = sbr.rel (0) target = $region25
    $region24: #{tpu_custom_call.1} parent=1 // pred_region
      _
    $region25: #{tpu_custom_call.1} parent=1 // pred_fallthru
      _
    // Predicated region
    $region26: #{tpu_custom_call.1} parent=1 // pred_check
      _
    $region27: #{tpu_custom_call.1} parent=1 // pred_check_branch
      %32 = sbr.rel (0) target = $region29
    $region28: #{tpu_custom_call.1} parent=1 // pred_region
      _
    $region29: #{tpu_custom_call.1} parent=1 // pred_fallthru
      _
    // Predicated region
    $region30: #{tpu_custom_call.1} parent=1 // pred_check
      _
    $region31: #{tpu_custom_call.1} parent=1 // pred_check_branch
      %34 = sbr.rel (0) target = $region33
    $region32: #{tpu_custom_call.1} parent=1 // pred_region
      _
    $region33: #{tpu_custom_call.1} parent=1 // pred_fallthru
      _
    // Predicated region
    $region34: #{tpu_custom_call.1} parent=1 // pred_check
      _
    $region35: #{tpu_custom_call.1} parent=1 // pred_check_branch
      %36 = sbr.rel (0) target = $region37
    $region36: #{tpu_custom_call.1} parent=1 // pred_region
      _
    $region37: #{tpu_custom_call.1} parent=1 // pred_fallthru
      _
    // Predicated region
    $region38: #{tpu_custom_call.1} parent=1 // pred_check
      _
    $region39: #{tpu_custom_call.1} parent=1 // pred_check_branch
      %38 = sbr.rel (0) target = $region41
    $region40: #{tpu_custom_call.1} parent=1 // pred_region
      _
    $region41: #{tpu_custom_call.1} parent=1 // pred_fallthru
      _
    // Predicated region
    $region42: #{tpu_custom_call.1} parent=1 // pred_check
      _
    $region43: #{tpu_custom_call.1} parent=1 // pred_check_branch
      %40 = sbr.rel (0) target = $region45
    $region44: #{tpu_custom_call.1} parent=1 // pred_region
      _
    $region45: #{tpu_custom_call.1} parent=1 // pred_fallthru
      _
    %v42 = vld [vmem:[%s0] sm:$0xff]
    %v43 = vld [vmem:[%s0 + $0x8] sm:$0xff]
    %v44 = vld [vmem:[%s1] sm:$0xf]
    %v45 = vld [vmem:[%s1 + $0x4] sm:$0xf]
    %v46 = vld [vmem:[%s3] sm:$0xf]
    %v49 = vunpack.c.l.b16 %v44
    %v50 = vunpack.c.l.b16 %v45
    %v51 = vpack.c.b16 %v50, %v49
    %vm52 = vcmask 64512
    %v54 = vsel %vm52, %v51, 0
    %vm56 = vcmask 1043456
    %v58 = vsel %vm56, %v46, 0
    %60 = vmatprep.subr.bf16.mxu0 0
    %61 = vmatpush1.bf16.msra.mxu0 %v58
    %62 = vmatprep.subr.bf16.mxu0 0
    %63 = vmatpush1.bf16.msra.mxu0 0
    %64 = vmatprep.subr.bf16.mxu0 0
    %65 = vmatpush1.bf16.msra.mxu0 0
    %66 = vmatprep.subr.bf16.mxu0 0
    %67 = vmatpush1.bf16.msra.mxu0 0
    %68 = vmatprep.subr.bf16.mxu0 0
    %69 = vmatpush1.bf16.msra.mxu0 0
    %70 = vmatprep.subr.bf16.mxu0 0
    %71 = vmatpush1.bf16.msra.mxu0 0
    %72 = vmatprep.subr.bf16.mxu0 0
    %73 = vmatpush1.bf16.msra.mxu0 0
    %74 = vmatprep.subr.bf16.mxu0 0
    %75 = vmatpush1.bf16.msra.mxu0 0
    %76 = vmatprep.subr.bf16.mxu0 0
    %77 = vmatpush1.bf16.msra.mxu0 0
    %78 = vmatprep.subr.bf16.mxu0 0
    %79 = vmatpush1.bf16.msra.mxu0 0
    %80 = vmatprep.subr.bf16.mxu0 0
    %81 = vmatpush1.bf16.msra.mxu0 0
    %82 = vmatprep.subr.bf16.mxu0 0
    %83 = vmatpush1.bf16.msra.mxu0 0
    %84 = vmatprep.subr.bf16.mxu0 0
    %85 = vmatpush1.bf16.msra.mxu0 0
    %86 = vmatprep.subr.bf16.mxu0 0
    %87 = vmatpush1.bf16.msra.mxu0 0
    %88 = vmatprep.subr.bf16.mxu0 0
    %89 = vmatpush1.bf16.msra.mxu0 0
    %90 = vmatprep.subr.bf16.mxu0 0
    %91 = vmatpush1.bf16.msra.mxu0 0
    %92 = vmatprep.mubr.bf16.mxu0 0
    %93 = vmatmul.mubr.bf16.gmra.mrb[0].mxu0 %v54
    %v94 = vpop.f32.mrb[0].mxu0
    %v95 = vadd.f32 0.0, %v94
    %v96 = vpop.f32.mrb[0].mxu0
    %v97 = vpop.f32.mrb[0].mxu0
    %v98 = vadd.f32 0.0, %v97
    %v99 = vpop.f32.mrb[0].mxu0
    %100 = vdwg.mxu0
    %103 = vrot.lane.b32.xlu0 %v95, 120
    %v104 = vpop.permute.xlu0 %103
    %105 = vrot.lane.b32.xlu0 %v98, 120
    %v106 = vpop.permute.xlu0 %105
    %109 = vrot.lane.b32.xlu0 %v95, 112
    %v110 = vpop.permute.xlu0 %109
    %111 = vrot.lane.b32.xlu0 %v98, 112
    %v112 = vpop.permute.xlu0 %111
    %115 = vrot.lane.b32.xlu0 %v95, 104
    %v116 = vpop.permute.xlu0 %115
    %117 = vrot.lane.b32.xlu0 %v98, 104
    %v118 = vpop.permute.xlu0 %117
    %v121 = vld [vmem:[%s4] sm:$0x1]
    %v123 = vlaneseq
    %v124 = vshrl.u32 %v123, 7
    %v125 = vsub.s32 0, %v124
    %v126 = vrot.slane %v121, %v125
    %vm128 = vcmask 523264
    %v130 = vsel %vm128, %v42, 0
    %v133 = vsel %vm128, %v43, 0
    %135 = vmatprep.subr.mxu0 0.0
    %136 = vmatpush1.msra.mxu0 %v95
    %137 = vmatprep.subr.mxu0 0.0
    %138 = vmatpush1.msra.mxu0 %v98
    %139 = vmatprep.subr.mxu0 0.0
    %140 = vmatpush1.msra.mxu0 %v104
    %141 = vmatprep.subr.mxu0 0.0
    %142 = vmatpush1.msra.mxu0 %v106
    %143 = vmatprep.subr.mxu0 0.0
    %144 = vmatpush1.msra.mxu0 %v110
    %145 = vmatprep.subr.mxu0 0.0
    %146 = vmatpush1.msra.mxu0 %v112
    %147 = vmatprep.subr.mxu0 0.0
    %148 = vmatpush1.msra.mxu0 %v116
    %149 = vmatprep.subr.mxu0 0.0
    %150 = vmatpush1.msra.mxu0 %v118
    %151 = vmatprep.subr.mxu0 0.0
    %152 = vmatpush1.msra.mxu0 0.0
    %153 = vmatprep.subr.mxu0 0.0
    %154 = vmatpush1.msra.mxu0 0.0
    %155 = vmatprep.subr.mxu0 0.0
    %156 = vmatpush1.msra.mxu0 0.0
    %157 = vmatprep.subr.mxu0 0.0
    %158 = vmatpush1.msra.mxu0 0.0
    %159 = vmatprep.subr.mxu0 0.0
    %160 = vmatpush1.msra.mxu0 0.0
    %161 = vmatprep.subr.mxu0 0.0
    %162 = vmatpush1.msra.mxu0 0.0
    %163 = vmatprep.subr.mxu0 0.0
    %164 = vmatpush1.msra.mxu0 0.0
    %165 = vmatprep.subr.mxu0 0.0
    %166 = vmatpush1.msra.mxu0 0.0
    %167 = vmatprep.subr.mxu0 0.0
    %168 = vmatpush1.msra.mxu0 0.0
    %169 = vmatprep.subr.mxu0 0.0
    %170 = vmatpush1.msra.mxu0 0.0
    %171 = vmatprep.subr.mxu0 0.0
    %172 = vmatpush1.msra.mxu0 0.0
    %173 = vmatprep.subr.mxu0 0.0
    %174 = vmatpush1.msra.mxu0 0.0
    %175 = vmatprep.subr.mxu0 0.0
    %176 = vmatpush1.msra.mxu0 0.0
    %177 = vmatprep.subr.mxu0 0.0
    %178 = vmatpush1.msra.mxu0 0.0
    %179 = vmatprep.subr.mxu0 0.0
    %180 = vmatpush1.msra.mxu0 0.0
    %181 = vmatprep.subr.mxu0 0.0
    %182 = vmatpush1.msra.mxu0 0.0
    %183 = vmatprep.subr.mxu0 0.0
    %184 = vmatpush1.msra.mxu0 0.0
    %185 = vmatprep.subr.mxu0 0.0
    %186 = vmatpush1.msra.mxu0 0.0
    %187 = vmatprep.subr.mxu0 0.0
    %188 = vmatpush1.msra.mxu0 0.0
    %189 = vmatprep.subr.mxu0 0.0
    %190 = vmatpush1.msra.mxu0 0.0
    %191 = vmatprep.subr.mxu0 0.0
    %192 = vmatpush1.msra.mxu0 0.0
    %193 = vmatprep.subr.mxu0 0.0
    %194 = vmatpush1.msra.mxu0 0.0
    %195 = vmatprep.subr.mxu0 0.0
    %196 = vmatpush1.msra.mxu0 0.0
    %197 = vmatprep.subr.mxu0 0.0
    %198 = vmatpush1.msra.mxu0 0.0
    %199 = vmatprep.mubr.f32.mxu0 0.0
    %200 = vmatmul.mubr.f32.gmra.mrb[0].mxu0 %v130
    %v201 = vpop.f32.mrb[0].mxu0
    %v202 = vadd.f32 %v126, %v201
    %v203 = vpop.f32.mrb[0].mxu0
    %204 = vmatprep.mubr.f32.mxu0 0.0
    %205 = vmatmul.mubr.f32.gmra.mrb[0].mxu0 %v133
    %v206 = vpop.f32.mrb[0].mxu0
    %v207 = vadd.f32 %v126, %v206
    %v208 = vpop.f32.mrb[0].mxu0
    %209 = vdwg.mxu0
    %v210 = vmax.f32 %v202, 0.0
    %v211 = vmax.f32 %v207, 0.0
    %v212 = vpack.c.bf16 %v211, %v210
    %v213 = vld [vmem:[%s5] sm:$0xf]
    %v215 = vsel %vm52, %v212, 0
    %v218 = vsel %vm56, %v213, 0
    %220 = vmatprep.subr.bf16.mxu0 0
    %221 = vmatpush1.bf16.msra.mxu0 %v218
    %222 = vmatprep.subr.bf16.mxu0 0
    %223 = vmatpush1.bf16.msra.mxu0 0
    %224 = vmatprep.subr.bf16.mxu0 0
    %225 = vmatpush1.bf16.msra.mxu0 0
    %226 = vmatprep.subr.bf16.mxu0 0
    %227 = vmatpush1.bf16.msra.mxu0 0
    %228 = vmatprep.subr.bf16.mxu0 0
    %229 = vmatpush1.bf16.msra.mxu0 0
    %230 = vmatprep.subr.bf16.mxu0 0
    %231 = vmatpush1.bf16.msra.mxu0 0
    %232 = vmatprep.subr.bf16.mxu0 0
    %233 = vmatpush1.bf16.msra.mxu0 0
    %234 = vmatprep.subr.bf16.mxu0 0
    %235 = vmatpush1.bf16.msra.mxu0 0
    %236 = vmatprep.subr.bf16.mxu0 0
    %237 = vmatpush1.bf16.msra.mxu0 0
    %238 = vmatprep.subr.bf16.mxu0 0
    %239 = vmatpush1.bf16.msra.mxu0 0
    %240 = vmatprep.subr.bf16.mxu0 0
    %241 = vmatpush1.bf16.msra.mxu0 0
    %242 = vmatprep.subr.bf16.mxu0 0
    %243 = vmatpush1.bf16.msra.mxu0 0
    %244 = vmatprep.subr.bf16.mxu0 0
    %245 = vmatpush1.bf16.msra.mxu0 0
    %246 = vmatprep.subr.bf16.mxu0 0
    %247 = vmatpush1.bf16.msra.mxu0 0
    %248 = vmatprep.subr.bf16.mxu0 0
    %249 = vmatpush1.bf16.msra.mxu0 0
    %250 = vmatprep.subr.bf16.mxu0 0
    %251 = vmatpush1.bf16.msra.mxu0 0
    %252 = vmatprep.mubr.bf16.mxu0 0
    %253 = vmatmul.mubr.bf16.gmra.mrb[0].mxu0 %v215
    %v254 = vpop.f32.mrb[0].mxu0
    %v255 = vadd.f32 0.0, %v254
    %v256 = vpop.f32.mrb[0].mxu0
    %v257 = vpop.f32.mrb[0].mxu0
    %v258 = vadd.f32 0.0, %v257
    %v259 = vpop.f32.mrb[0].mxu0
    %260 = vdwg.mxu0
    %263 = vrot.lane.b32.xlu0 %v255, 112
    %v264 = vpop.permute.xlu0 %263
    %265 = vrot.lane.b32.xlu0 %v258, 112
    %v266 = vpop.permute.xlu0 %265
    %269 = vrot.lane.b32.xlu0 %v255, 96
    %v270 = vpop.permute.xlu0 %269
    %271 = vrot.lane.b32.xlu0 %v258, 96
    %v272 = vpop.permute.xlu0 %271
    %275 = vrot.lane.b32.xlu0 %v255, 80
    %v276 = vpop.permute.xlu0 %275
    %277 = vrot.lane.b32.xlu0 %v258, 80
    %v278 = vpop.permute.xlu0 %277
    %v281 = vld [vmem:[%s6] sm:$0x1]
    %v283 = vlaneseq
    %v284 = vshrl.u32 %v283, 7
    %v285 = vsub.s32 0, %v284
    %v286 = vrot.slane %v281, %v285
    %288 = vmatprep.subr.mxu0 0.0
    %289 = vmatpush1.msra.mxu0 %v255
    %290 = vmatprep.subr.mxu0 0.0
    %291 = vmatpush1.msra.mxu0 %v258
    %292 = vmatprep.subr.mxu0 0.0
    %293 = vmatpush1.msra.mxu0 %v264
    %294 = vmatprep.subr.mxu0 0.0
    %295 = vmatpush1.msra.mxu0 %v266
    %296 = vmatprep.subr.mxu0 0.0
    %297 = vmatpush1.msra.mxu0 %v270
    %298 = vmatprep.subr.mxu0 0.0
    %299 = vmatpush1.msra.mxu0 %v272
    %300 = vmatprep.subr.mxu0 0.0
    %301 = vmatpush1.msra.mxu0 %v276
    %302 = vmatprep.subr.mxu0 0.0
    %303 = vmatpush1.msra.mxu0 %v278
    %304 = vmatprep.subr.mxu0 0.0
    %305 = vmatpush1.msra.mxu0 0.0
    %306 = vmatprep.subr.mxu0 0.0
    %307 = vmatpush1.msra.mxu0 0.0
    %308 = vmatprep.subr.mxu0 0.0
    %309 = vmatpush1.msra.mxu0 0.0
    %310 = vmatprep.subr.mxu0 0.0
    %311 = vmatpush1.msra.mxu0 0.0
    %312 = vmatprep.subr.mxu0 0.0
    %313 = vmatpush1.msra.mxu0 0.0
    %314 = vmatprep.subr.mxu0 0.0
    %315 = vmatpush1.msra.mxu0 0.0
    %316 = vmatprep.subr.mxu0 0.0
    %317 = vmatpush1.msra.mxu0 0.0
    %318 = vmatprep.subr.mxu0 0.0
    %319 = vmatpush1.msra.mxu0 0.0
    %320 = vmatprep.subr.mxu0 0.0
    %321 = vmatpush1.msra.mxu0 0.0
    %322 = vmatprep.subr.mxu0 0.0
    %323 = vmatpush1.msra.mxu0 0.0
    %324 = vmatprep.subr.mxu0 0.0
    %325 = vmatpush1.msra.mxu0 0.0
    %326 = vmatprep.subr.mxu0 0.0
    %327 = vmatpush1.msra.mxu0 0.0
    %328 = vmatprep.subr.mxu0 0.0
    %329 = vmatpush1.msra.mxu0 0.0
    %330 = vmatprep.subr.mxu0 0.0
    %331 = vmatpush1.msra.mxu0 0.0
    %332 = vmatprep.subr.mxu0 0.0
    %333 = vmatpush1.msra.mxu0 0.0
    %334 = vmatprep.subr.mxu0 0.0
    %335 = vmatpush1.msra.mxu0 0.0
    %336 = vmatprep.subr.mxu0 0.0
    %337 = vmatpush1.msra.mxu0 0.0
    %338 = vmatprep.subr.mxu0 0.0
    %339 = vmatpush1.msra.mxu0 0.0
    %340 = vmatprep.subr.mxu0 0.0
    %341 = vmatpush1.msra.mxu0 0.0
    %342 = vmatprep.subr.mxu0 0.0
    %343 = vmatpush1.msra.mxu0 0.0
    %344 = vmatprep.subr.mxu0 0.0
    %345 = vmatpush1.msra.mxu0 0.0
    %346 = vmatprep.subr.mxu0 0.0
    %347 = vmatpush1.msra.mxu0 0.0
    %348 = vmatprep.subr.mxu0 0.0
    %349 = vmatpush1.msra.mxu0 0.0
    %350 = vmatprep.subr.mxu0 0.0
    %351 = vmatpush1.msra.mxu0 0.0
    %352 = vmatprep.mubr.f32.mxu0 0.0
    %353 = vmatmul.mubr.f32.gmra.mrb[0].mxu0 %v130
    %v354 = vpop.f32.mrb[0].mxu0
    %v355 = vadd.f32 %v286, %v354
    %v356 = vpop.f32.mrb[0].mxu0
    %357 = vmatprep.mubr.f32.mxu0 0.0
    %358 = vmatmul.mubr.f32.gmra.mrb[0].mxu0 %v133
    %v359 = vpop.f32.mrb[0].mxu0
    %v360 = vadd.f32 %v286, %v359
    %v361 = vpop.f32.mrb[0].mxu0
    %362 = vdwg.mxu0
    %v363 = vmax.f32 %v355, 0.0
    %v364 = vmax.f32 %v360, 0.0
    %v365 = vpack.c.bf16 %v364, %v363
    %v366 = vld [vmem:[%s7] sm:$0xf]
    %v367 = vld [vmem:[%s7 + $0x4] sm:$0xf]
    %v368 = vld [vmem:[%s8] sm:$0x1]
    %v370 = vlaneseq
    %v371 = vshrl.u32 %v370, 7
    %v372 = vsub.s32 0, %v371
    %v373 = vrot.slane %v368, %v372
    %v377 = vunpack.c.l.b16 %v366
    %v378 = vunpack.c.l.b16 %v367
    %v379 = vpack.c.b16 %v378, %v377
    %vm381 = vcmask 130048
    %v383 = vsel %vm381, %v365, 0
    %385 = vmatprep.subr.bf16.mxu0 0
    %386 = vmatpush1.bf16.msra.mxu0 %v379
    %387 = vmatprep.subr.bf16.mxu0 0
    %388 = vmatpush1.bf16.msra.mxu0 0
    %389 = vmatprep.subr.bf16.mxu0 0
    %390 = vmatpush1.bf16.msra.mxu0 0
    %391 = vmatprep.subr.bf16.mxu0 0
    %392 = vmatpush1.bf16.msra.mxu0 0
    %393 = vmatprep.subr.bf16.mxu0 0
    %394 = vmatpush1.bf16.msra.mxu0 0
    %395 = vmatprep.subr.bf16.mxu0 0
    %396 = vmatpush1.bf16.msra.mxu0 0
    %397 = vmatprep.subr.bf16.mxu0 0
    %398 = vmatpush1.bf16.msra.mxu0 0
    %399 = vmatprep.subr.bf16.mxu0 0
    %400 = vmatpush1.bf16.msra.mxu0 0
    %401 = vmatprep.subr.bf16.mxu0 0
    %402 = vmatpush1.bf16.msra.mxu0 0
    %403 = vmatprep.subr.bf16.mxu0 0
    %404 = vmatpush1.bf16.msra.mxu0 0
    %405 = vmatprep.subr.bf16.mxu0 0
    %406 = vmatpush1.bf16.msra.mxu0 0
    %407 = vmatprep.subr.bf16.mxu0 0
    %408 = vmatpush1.bf16.msra.mxu0 0
    %409 = vmatprep.subr.bf16.mxu0 0
    %410 = vmatpush1.bf16.msra.mxu0 0
    %411 = vmatprep.subr.bf16.mxu0 0
    %412 = vmatpush1.bf16.msra.mxu0 0
    %413 = vmatprep.subr.bf16.mxu0 0
    %414 = vmatpush1.bf16.msra.mxu0 0
    %415 = vmatprep.subr.bf16.mxu0 0
    %416 = vmatpush1.bf16.msra.mxu0 0
    %417 = vmatprep.mubr.bf16.mxu0 0
    %418 = vmatmul.mubr.bf16.gmra.mrb[0].mxu0 %v383
    %v419 = vpop.f32.mrb[0].mxu0
    %v420 = vadd.f32 %v373, %v419
    %v421 = vpop.f32.mrb[0].mxu0
    %v422 = vpop.f32.mrb[0].mxu0
    %v423 = vadd.f32 %v373, %v422
    %v424 = vpop.f32.mrb[0].mxu0
    %425 = vdwg.mxu0
    %v426 = vmax.f32 %v420, 0.0
    %v427 = vmax.f32 %v423, 0.0
    %428 = vst.msk [vmem:[#allocation2] sm:$0xff] %vm381, %v426
    %429 = vst.msk [vmem:[#allocation2 + $0x8] sm:$0xff] %vm381, %v427
    %v430 = vld [vmem:[%s2] sm:$0xf]
    %v431 = vld [vmem:[%s2 + $0x4] sm:$0xf]
    %v432 = vld [vmem:[%s2 + $0x8] sm:$0xf]
    %v433 = vld [vmem:[%s2 + $0xc] sm:$0xf]
    %v434 = vld [vmem:[%s9] sm:$0xf]
    %v435 = vld [vmem:[%s10] sm:$0x1]
    %v437 = vlaneseq
    %v438 = vshrl.u32 %v437, 7
    %v439 = vsub.s32 0, %v438
    %v440 = vrot.slane %v435, %v439
    %v446 = vunpack.c.l.b16 %v430
    %v447 = vunpack.c.l.b16 %v431
    %v448 = vunpack.c.l.b16 %v432
    %v449 = vunpack.c.l.b16 %v433
    %v450 = vpack.c.b16 %v447, %v446
    %v451 = vpack.c.b16 %v449, %v448
    %v453 = vsel %vm52, %v450, 0
    %v456 = vsel %vm52, %v451, 0
    %v459 = vsel %vm56, %v434, 0
    %461 = vmatprep.subr.bf16.mxu0 0
    %462 = vmatpush1.bf16.msra.mxu0 %v459
    %463 = vmatprep.subr.bf16.mxu0 0
    %464 = vmatpush1.bf16.msra.mxu0 0
    %465 = vmatprep.subr.bf16.mxu0 0
    %466 = vmatpush1.bf16.msra.mxu0 0
    %467 = vmatprep.subr.bf16.mxu0 0
    %468 = vmatpush1.bf16.msra.mxu0 0
    %469 = vmatprep.subr.bf16.mxu0 0
    %470 = vmatpush1.bf16.msra.mxu0 0
    %471 = vmatprep.subr.bf16.mxu0 0
    %472 = vmatpush1.bf16.msra.mxu0 0
    %473 = vmatprep.subr.bf16.mxu0 0
    %474 = vmatpush1.bf16.msra.mxu0 0
    %475 = vmatprep.subr.bf16.mxu0 0
    %476 = vmatpush1.bf16.msra.mxu0 0
    %477 = vmatprep.subr.bf16.mxu0 0
    %478 = vmatpush1.bf16.msra.mxu0 0
    %479 = vmatprep.subr.bf16.mxu0 0
    %480 = vmatpush1.bf16.msra.mxu0 0
    %481 = vmatprep.subr.bf16.mxu0 0
    %482 = vmatpush1.bf16.msra.mxu0 0
    %483 = vmatprep.subr.bf16.mxu0 0
    %484 = vmatpush1.bf16.msra.mxu0 0
    %485 = vmatprep.subr.bf16.mxu0 0
    %486 = vmatpush1.bf16.msra.mxu0 0
    %487 = vmatprep.subr.bf16.mxu0 0
    %488 = vmatpush1.bf16.msra.mxu0 0
    %489 = vmatprep.subr.bf16.mxu0 0
    %490 = vmatpush1.bf16.msra.mxu0 0
    %491 = vmatprep.subr.bf16.mxu0 0
    %492 = vmatpush1.bf16.msra.mxu0 0
    %493 = vmatprep.mubr.bf16.mxu0 0
    %494 = vmatmul.mubr.bf16.gmra.mrb[0].mxu0 %v453
    %v495 = vpop.f32.mrb[0].mxu0
    %v496 = vadd.f32 %v440, %v495
    %v497 = vpop.f32.mrb[0].mxu0
    %v498 = vpop.f32.mrb[0].mxu0
    %v499 = vadd.f32 %v440, %v498
    %v500 = vpop.f32.mrb[0].mxu0
    %501 = vmatprep.mubr.bf16.mxu0 0
    %502 = vmatmul.mubr.bf16.gmra.mrb[0].mxu0 %v456
    %v503 = vpop.f32.mrb[0].mxu0
    %v504 = vadd.f32 %v440, %v503
    %v505 = vpop.f32.mrb[0].mxu0
    %v506 = vpop.f32.mrb[0].mxu0
    %v507 = vadd.f32 %v440, %v506
    %v508 = vpop.f32.mrb[0].mxu0
    %509 = vdwg.mxu0
    %510 = vst.msk [vmem:[%s12] sm:$0xff] %vm381, %v496
    %511 = vst.msk [vmem:[%s12 + $0x8] sm:$0xff] %vm381, %v499
    %512 = vst.msk [vmem:[%s12 + $0x10] sm:$0xff] %vm381, %v504
    %513 = vst.msk [vmem:[%s12 + $0x18] sm:$0xff] %vm381, %v507
    // Predicated region
    $region46: #{tpu_custom_call.1} parent=1 // pred_check
      _
    $region47: #{tpu_custom_call.1} parent=1 // pred_check_branch
      %515 = sbr.rel (0) target = $region49
    $region48: #{tpu_custom_call.1} parent=1 // pred_region
      %s517 = ssub.s32 256, 256
      %518 = vsyncadd [#allocation3], %s517
      %s519 = sshll.u32 [#allocation2], 4
      %s520 = int_to_ptr.vmem [resolvable:$true] %s519
      %525 = dma.vmem_to_hbm [thread:$0]  %s520, 256, %s11, [#allocation3], 128, 128, 8
    $region49: #{tpu_custom_call.1} parent=1 // pred_fallthru
      _
    // Predicated region
    $region50: #{tpu_custom_call.1} parent=1 // pred_check
      _
    $region51: #{tpu_custom_call.1} parent=1 // pred_check_branch
      %527 = sbr.rel (0) target = $region53
    $region52: #{tpu_custom_call.1} parent=1 // pred_region
      _
    $region53: #{tpu_custom_call.1} parent=1 // pred_fallthru
      _
    // Predicated region
    $region54: #{tpu_custom_call.1} parent=1 // pred_check
      _
    $region55: #{tpu_custom_call.1} parent=1 // pred_check_branch
      %529 = sbr.rel (0) target = $region57
    $region56: #{tpu_custom_call.1} parent=1 // pred_region
      %530 = dma.done [#allocation3], 256
    $region57: #{tpu_custom_call.1} parent=1 // pred_fallthru
      _
    // Predicated region
    $region58: #{tpu_custom_call.1} parent=1 // pred_check
      _
    $region59: #{tpu_custom_call.1} parent=1 // pred_check_branch
      %532 = sbr.rel (0) target = $region61
    $region60: #{tpu_custom_call.1} parent=1 // pred_region
      _
    $region61: #{tpu_custom_call.1} parent=1 // pred_fallthru
      _
    %533 = vsyncpa [#allocation3], 1

</llo_original>
